<compile_context>
chip_gen: v6e
topology: v6e:2x2x1
jax: 0.10.0
libtpu: 0.0.40
codegen_flags: <defaults>
</compile_context>

<pallas_src>
import functools

import jax
import jax.numpy as jnp
from jax.experimental import pallas as pl
from jax.experimental.pallas import tpu as pltpu


def _tversky_kernel(x_ref, t_ref, tp_ref, sp_ref, cnt_ref, *,
                    n_valid, mask_needed):
    """One (batch, spatial-split, row-tile) grid step.

    x_ref  : (1, C, TR, 128) logits tile (native dtype; upcast after the load)
    t_ref  : (1, TR, 128)    integer target labels (int8 or int32)
    tp/sp/cnt_ref : (1, 1, C, 128) f32 accumulators, resident across the last
        (reduction) grid axis.  sp = sum softmax probs, cnt = one-hot count;
        FP = sp - TP and FN = cnt - TP are recovered in the JAX glue.
    """
    k = pl.program_id(2)

    @pl.when(k == 0)
    def _():
        tp_ref[...] = jnp.zeros_like(tp_ref)
        sp_ref[...] = jnp.zeros_like(sp_ref)
        cnt_ref[...] = jnp.zeros_like(cnt_ref)

    _, C, TR, L = x_ref.shape

    tgt = t_ref[0].astype(jnp.int32)                       # (TR, 128)

    valid = None
    if mask_needed:
        # Global flat position of every element in this tile; masks padded
        # lanes and row-tiles that overrun the array.  Kept in lockstep with
        # the BlockSpec index_map: row-block index = s * tps + k.
        row0 = (pl.program_id(1) * pl.num_programs(2) + k) * TR
        rows = jax.lax.broadcasted_iota(jnp.int32, (TR, L), 0) + row0
        lanes = jax.lax.broadcasted_iota(jnp.int32, (TR, L), 1)
        valid = rows * L + lanes < n_valid
        # Out-of-range class id so garbage / padded labels never count as hits.
        tgt = jnp.where(valid, tgt, C)

    # Per-channel dense slabs, upcast to f32 only after the VMEM load.
    # TODO(synk): optional bf16 softmax math on v6e/v7x (kept f32 here for
    # v5e compatibility and to stay inside the 1e-4 accuracy tolerance).
    xs = [x_ref[0, c].astype(jnp.float32) for c in range(C)]

    # Numerically stable channel softmax as an unrolled loop over C slabs.
    m = xs[0]
    for c in range(1, C):
        m = jnp.maximum(m, xs[c])

    es = []
    denom = None
    for c in range(C):
        e = jnp.exp(xs[c] - m)
        if mask_needed:
            e = jnp.where(valid, e, 0.0)       # where (not mul): NaN-safe
        es.append(e)
        denom = e if denom is None else denom + e
    if mask_needed:
        denom = jnp.where(valid, denom, 1.0)   # avoid 0-denominator on padding

    # One EUP reciprocal per position (+1 Newton step ~= exact f32) instead of
    # C full-size divides.
    inv = pl.reciprocal(denom, approx=True)
    inv = inv * (2.0 - denom * inv)

    for c in range(C):
        p = es[c] * inv                                    # (TR, 128) prob of class c
        hit = (tgt == c).astype(jnp.float32)               # one-hot slab (reused)
        # Row-direction reductions are mostly plain vreg adds; accumulate into
        # the lane-dense (C, 128) output rows.
        tp_ref[0, 0, c:c + 1, :] += jnp.sum(p * hit, axis=0, keepdims=True)
        sp_ref[0, 0, c:c + 1, :] += jnp.sum(p, axis=0, keepdims=True)
        cnt_ref[0, 0, c:c + 1, :] += jnp.sum(hit, axis=0, keepdims=True)


def _num_tensorcores():
    """Best-effort TensorCore count (2 on v7x, 1 on v5e/v6e); 1 on any failure."""
    try:
        info = pltpu.get_tpu_info()
        for name in ("num_tensorcores", "tensorcores_per_chip",
                     "num_cores_per_chip", "num_cores"):
            v = getattr(info, name, None)
            if v is not None:
                v = int(v)
                if v >= 1:
                    return v
    except Exception:
        pass
    return 1


@functools.partial(
    jax.jit,
    static_argnames=("alpha", "beta", "smooth", "tile_rows", "spatial_splits"),
)
def _tversky_loss_impl(inputs, targets, *, alpha, beta, smooth, tile_rows,
                       spatial_splits):
    if targets.ndim == inputs.ndim:
        targets = targets[:, 0, ...]

    B, C = inputs.shape[:2]
    N = 1
    for d in inputs.shape[2:]:
        N *= d

    x = inputs.reshape(B, C, N)                 # native dtype, no f32 cast pass
    t = targets.reshape(B, N)

    # Lane/sublane-dense slab layout: (B, C, R, 128).  Free metadata reshape
    # when N % 128 == 0 (the common nnU-Net patch case); otherwise pad the flat
    # axis once and mask the tail inside the kernel.
    R = pl.cdiv(N, 128)
    pad = R * 128 - N
    if pad:
        x = jnp.pad(x, ((0, 0), (0, 0), (0, pad)))
        t = jnp.pad(t, ((0, 0), (0, pad)))
    x = x.reshape(B, C, R, 128)
    t = t.reshape(B, R, 128)

    # Row-tile size.  Big tiles amortize the ~0.35us per-grid-step overhead;
    # clamp so the live f32 slab temporaries stay a few MiB even for large C.
    if tile_rows is None:
        tile_rows = 512
    max_rows = max(32, (8 * 1024 * 1024) // ((2 * C + 8) * 128 * 4))
    max_rows = max(8, (max_rows // 32) * 32)
    tile_rows = max(8, (min(tile_rows, max_rows) // 8) * 8)
    if R <= tile_rows:
        tile_rows = R            # single row-tile; full-extent block is legal

    # Targets at 1 B/voxel (instead of 4) whenever class count and row tiling
    # allow the int8 native (32, 128) layout.
    if C <= 127 and tile_rows % 32 == 0:
        t = t.astype(jnp.int8)
    else:
        t = t.astype(jnp.int32)

    n_row_tiles = pl.cdiv(R, tile_rows)
    S = max(1, min(spatial_splits, n_row_tiles))
    tps = pl.cdiv(n_row_tiles, S)               # row-tiles per spatial split
    grid = (B, S, tps)

    # Static flag: do the grid's blocks cover exactly N valid elements?
    mask_needed = (S * tps * tile_rows * 128) != N

    x_spec = pl.BlockSpec((1, C, tile_rows, 128),
                          lambda b, s, k: (b, 0, s * tps + k, 0))
    t_spec = pl.BlockSpec((1, tile_rows, 128),
                          lambda b, s, k: (b, s * tps + k, 0))
    acc_spec = pl.BlockSpec((1, 1, C, 128), lambda b, s, k: (b, s, 0, 0))
    acc_shape = jax.ShapeDtypeStruct((B, S, C, 128), jnp.float32)

    # VMEM budget from the real footprint (double-buffered input/output blocks
    # plus live f32 slabs), capped at 32 MiB so it stays well inside v7x's
    # 64 MiB per-TensorCore VMEM (and v5e/v6e's 128 MiB).
    blk_in = (C * x.dtype.itemsize + t.dtype.itemsize) * tile_rows * 128
    blk_out = 3 * C * 128 * 4
    live_f32 = (2 * C + 8) * tile_rows * 128 * 4
    vmem_limit = int(min(32 << 20,
                         max(24 << 20,
                             2 * (2 * blk_in + 2 * blk_out + live_f32))))

    kernel = functools.partial(_tversky_kernel, n_valid=N,
                               mask_needed=mask_needed)

    tp, sp, cnt = pl.pallas_call(
        kernel,
        out_shape=(acc_shape, acc_shape, acc_shape),
        grid_spec=pltpu.PrefetchScalarGridSpec(
            num_scalar_prefetch=0,
            grid=grid,
            in_specs=[x_spec, t_spec],
            out_specs=(acc_spec, acc_spec, acc_spec),
        ),
        compiler_params=pltpu.CompilerParams(
            dimension_semantics=("parallel", "parallel", "arbitrary"),
            vmem_limit_bytes=vmem_limit,
        ),
    )(x, t)

    # Tiny (B, C)-sized combine in plain JAX: fold the spatial-split axis and
    # the 128 lanes, then recover FP / FN from the three accumulated sums.
    # (f32 sums are exact for counts up to ~2^24 voxels per class & batch item,
    #  far beyond typical nnU-Net patch sizes.)
    tp = tp.sum(axis=(1, 3))                    # (B, C)
    sum_p = sp.sum(axis=(1, 3))
    cnt = cnt.sum(axis=(1, 3))
    fp = sum_p - tp
    fn = cnt - tp

    tversky = (tp + smooth) / (tp + alpha * fp + beta * fn + smooth)
    return jnp.mean(1.0 - tversky)


def tversky_loss(inputs, targets, *, alpha=0.5, beta=0.5, smooth=1.0,
                 tile_rows=None, spatial_splits=None):
    """inputs: (B, C, *spatial) logits (any float dtype); targets: (B, *spatial)
    or (B, 1, *spatial) integer class labels.  Returns the scalar f32 loss."""
    if spatial_splits is None:
        # Split the spatial reduction only when the chip has 2 TensorCores
        # (v7x) and the batch alone would leave one of them idle.
        B = inputs.shape[0]
        spatial_splits = 2 if (_num_tensorcores() >= 2 and B % 2 == 1) else 1
    return _tversky_loss_impl(inputs, targets, alpha=float(alpha),
                              beta=float(beta), smooth=float(smooth),
                              tile_rows=tile_rows,
                              spatial_splits=int(spatial_splits))


def _reference_loss(inputs, targets, alpha=0.5, beta=0.5, smooth=1.0):
    if targets.ndim == inputs.ndim:
        targets = targets[:, 0, ...]
    B, C = inputs.shape[:2]
    probs = jax.nn.softmax(inputs.astype(jnp.float32), axis=1)
    t_onehot = jax.nn.one_hot(targets.astype(jnp.int32), C, axis=1,
                              dtype=jnp.float32)
    p = probs.reshape(B, C, -1)
    t = t_onehot.reshape(B, C, -1)
    TP = (p * t).sum(-1)
    FP = (p * (1 - t)).sum(-1)
    FN = ((1 - p) * t).sum(-1)
    tversky = (TP + smooth) / (TP + alpha * FP + beta * FN + smooth)
    return jnp.mean(1.0 - tversky)


if __name__ == "__main__":
    key = jax.random.PRNGKey(0)
    ks = jax.random.split(key, 8)

    def _check(loss, ref):
        assert jnp.allclose(loss, ref, atol=1e-4, rtol=1e-4), (loss, ref)

    # Case 1: small volume, bf16 logits, N % 128 == 0 (single unmasked tile).
    B, C, D, H, W = 2, 4, 4, 8, 8                       # N = 256
    logits = jax.random.normal(ks[0], (B, C, D, H, W),
                               dtype=jnp.float32).astype(jnp.bfloat16)
    targets = jax.random.randint(ks[1], (B, D, H, W), 0, C, dtype=jnp.int32)
    loss = tversky_loss(logits, targets)
    jax.block_until_ready(loss)
    _check(loss, _reference_loss(logits, targets))

    # Case 2: ragged spatial size (N = 420, not a multiple of 128), f32 logits,
    # 5-D (B, 1, D, H, W) targets -> exercises the padded + masked path.
    B, C, D, H, W = 2, 4, 3, 10, 14
    logits = jax.random.normal(ks[2], (B, C, D, H, W), dtype=jnp.float32)
    targets = jax.random.randint(ks[3], (B, 1, D, H, W), 0, C, dtype=jnp.int32)
    loss = tversky_loss(logits, targets)
    jax.block_until_ready(loss)
    _check(loss, _reference_loss(logits, targets))

    # Case 3: multi-tile reduction along the k axis plus a 2-way spatial split
    # (combined in the JAX glue); grid = (1, 2, 4).
    B, C, D, H, W = 1, 3, 8, 32, 32                     # N = 8192, R = 64
    logits = jax.random.normal(ks[4], (B, C, D, H, W), dtype=jnp.bfloat16)
    targets = jax.random.randint(ks[5], (B, D, H, W), 0, C, dtype=jnp.int32)
    loss = tversky_loss(logits, targets, tile_rows=8, spatial_splits=2)
    jax.block_until_ready(loss)
    _check(loss, _reference_loss(logits, targets))

    # Case 4: default 512-row tiles with a partial (masked) last row-tile and
    # the int8 target path (R = 576 rows, C = 2, bf16 logits).
    B, C, D, H, W = 1, 2, 8, 96, 96                     # N = 73728
    logits = jax.random.normal(ks[6], (B, C, D, H, W), dtype=jnp.bfloat16)
    targets = jax.random.randint(ks[7], (B, D, H, W), 0, C, dtype=jnp.int32)
    loss = tversky_loss(logits, targets)
    jax.block_until_ready(loss)
    _check(loss, _reference_loss(logits, targets))

    print("KERNEL_OK")
</pallas_src>

<mosaic_0001>
module attributes {stable_mosaic.version = 11 : i64} {
  func.func @_tversky_kernel(%arg0: i32, %arg1: i32, %arg2: i32, %arg3: memref<1x4x2x128xbf16, #tpu.memory_space<vmem>>, %arg4: memref<1x2x128xi32, #tpu.memory_space<vmem>>, %arg5: memref<1x1x4x128xf32, #tpu.memory_space<vmem>>, %arg6: memref<1x1x4x128xf32, #tpu.memory_space<vmem>>, %arg7: memref<1x1x4x128xf32, #tpu.memory_space<vmem>>) attributes {dimension_semantics = [#tpu.dimension_semantics<parallel>, #tpu.dimension_semantics<parallel>, #tpu.dimension_semantics<arbitrary>], iteration_bounds = array<i64: 2, 1, 1>, scalar_prefetch = 0 : i64, scratch_operands = 0 : i64, tpu.core_type = #tpu.core_type<tc>, window_params = [{transform_indices = @transform_0, window_bounds = array<i64: 1, 4, 2, 128>}, {transform_indices = @transform_1, window_bounds = array<i64: 1, 2, 128>}, {transform_indices = @transform_2, window_bounds = array<i64: 1, 1, 4, 128>}, {transform_indices = @transform_3, window_bounds = array<i64: 1, 1, 4, 128>}, {transform_indices = @transform_4, window_bounds = array<i64: 1, 1, 4, 128>}]} {
    %c0_i32 = arith.constant 0 : i32
    %0 = arith.cmpi eq, %arg2, %c0_i32 : i32
    %1 = arith.extui %0 : i1 to i32
    %c0_i32_0 = arith.constant 0 : i32
    %2 = arith.cmpi ne, %1, %c0_i32_0 : i32
    scf.if %2 {
      %cst_125 = arith.constant 0.000000e+00 : f32
      %156 = vector.broadcast %cst_125 : f32 to vector<1x1x4x128xf32>
      %c0_126 = arith.constant 0 : index
      %c0_127 = arith.constant 0 : index
      %c0_128 = arith.constant 0 : index
      %c0_129 = arith.constant 0 : index
      %157 = vector.load %arg5[%c0_126, %c0_127, %c0_128, %c0_129] : memref<1x1x4x128xf32, #tpu.memory_space<vmem>>, vector<1x1x4x128xf32>
      tpu.vector_store %arg5[%c0_126, %c0_127, %c0_128, %c0_129], %156 {strides = array<i32>} : memref<1x1x4x128xf32, #tpu.memory_space<vmem>>, vector<1x1x4x128xf32>,
      %cst_130 = arith.constant 0.000000e+00 : f32
      %158 = vector.broadcast %cst_130 : f32 to vector<1x1x4x128xf32>
      %c0_131 = arith.constant 0 : index
      %c0_132 = arith.constant 0 : index
      %c0_133 = arith.constant 0 : index
      %c0_134 = arith.constant 0 : index
      %159 = vector.load %arg6[%c0_131, %c0_132, %c0_133, %c0_134] : memref<1x1x4x128xf32, #tpu.memory_space<vmem>>, vector<1x1x4x128xf32>
      tpu.vector_store %arg6[%c0_131, %c0_132, %c0_133, %c0_134], %158 {strides = array<i32>} : memref<1x1x4x128xf32, #tpu.memory_space<vmem>>, vector<1x1x4x128xf32>,
      %cst_135 = arith.constant 0.000000e+00 : f32
      %160 = vector.broadcast %cst_135 : f32 to vector<1x1x4x128xf32>
      %c0_136 = arith.constant 0 : index
      %c0_137 = arith.constant 0 : index
      %c0_138 = arith.constant 0 : index
      %c0_139 = arith.constant 0 : index
      %161 = vector.load %arg7[%c0_136, %c0_137, %c0_138, %c0_139] : memref<1x1x4x128xf32, #tpu.memory_space<vmem>>, vector<1x1x4x128xf32>
      tpu.vector_store %arg7[%c0_136, %c0_137, %c0_138, %c0_139], %160 {strides = array<i32>} : memref<1x1x4x128xf32, #tpu.memory_space<vmem>>, vector<1x1x4x128xf32>,
    } else {
    }
    %c0 = arith.constant 0 : index
    %c0_1 = arith.constant 0 : index
    %c0_2 = arith.constant 0 : index
    %3 = vector.load %arg4[%c0, %c0_1, %c0_2] : memref<1x2x128xi32, #tpu.memory_space<vmem>>, vector<1x2x128xi32>
    %4 = vector.shape_cast %3 : vector<1x2x128xi32> to vector<2x128xi32>
    %c0_3 = arith.constant 0 : index
    %c0_4 = arith.constant 0 : index
    %c0_5 = arith.constant 0 : index
    %c0_6 = arith.constant 0 : index
    %5 = vector.load %arg3[%c0_3, %c0_4, %c0_5, %c0_6] : memref<1x4x2x128xbf16, #tpu.memory_space<vmem>>, vector<1x1x2x128xbf16>
    %6 = vector.shape_cast %5 : vector<1x1x2x128xbf16> to vector<2x128xbf16>
    %7 = arith.extf %6 : vector<2x128xbf16> to vector<2x128xf32>
    %c0_7 = arith.constant 0 : index
    %c1 = arith.constant 1 : index
    %c0_8 = arith.constant 0 : index
    %c0_9 = arith.constant 0 : index
    %8 = vector.load %arg3[%c0_7, %c1, %c0_8, %c0_9] : memref<1x4x2x128xbf16, #tpu.memory_space<vmem>>, vector<1x1x2x128xbf16>
    %9 = vector.shape_cast %8 : vector<1x1x2x128xbf16> to vector<2x128xbf16>
    %10 = arith.extf %9 : vector<2x128xbf16> to vector<2x128xf32>
    %c0_10 = arith.constant 0 : index
    %c2 = arith.constant 2 : index
    %c0_11 = arith.constant 0 : index
    %c0_12 = arith.constant 0 : index
    %11 = vector.load %arg3[%c0_10, %c2, %c0_11, %c0_12] : memref<1x4x2x128xbf16, #tpu.memory_space<vmem>>, vector<1x1x2x128xbf16>
    %12 = vector.shape_cast %11 : vector<1x1x2x128xbf16> to vector<2x128xbf16>
    %13 = arith.extf %12 : vector<2x128xbf16> to vector<2x128xf32>
    %c0_13 = arith.constant 0 : index
    %c3 = arith.constant 3 : index
    %c0_14 = arith.constant 0 : index
    %c0_15 = arith.constant 0 : index
    %14 = vector.load %arg3[%c0_13, %c3, %c0_14, %c0_15] : memref<1x4x2x128xbf16, #tpu.memory_space<vmem>>, vector<1x1x2x128xbf16>
    %15 = vector.shape_cast %14 : vector<1x1x2x128xbf16> to vector<2x128xbf16>
    %16 = arith.extf %15 : vector<2x128xbf16> to vector<2x128xf32>
    %17 = arith.maximumf %7, %10 : vector<2x128xf32>
    %18 = arith.maximumf %17, %13 : vector<2x128xf32>
    %19 = arith.maximumf %18, %16 : vector<2x128xf32>
    %20 = arith.subf %7, %19 : vector<2x128xf32>
    %21 = math.exp %20 : vector<2x128xf32>
    %22 = arith.subf %10, %19 : vector<2x128xf32>
    %23 = math.exp %22 : vector<2x128xf32>
    %24 = arith.addf %21, %23 : vector<2x128xf32>
    %25 = arith.subf %13, %19 : vector<2x128xf32>
    %26 = math.exp %25 : vector<2x128xf32>
    %27 = arith.addf %24, %26 : vector<2x128xf32>
    %28 = arith.subf %16, %19 : vector<2x128xf32>
    %29 = math.exp %28 : vector<2x128xf32>
    %30 = arith.addf %27, %29 : vector<2x128xf32>
    %31 = tpu.reciprocal %30 {approx = true} : vector<2x128xf32> -> vector<2x128xf32>
    %32 = arith.mulf %30, %31 : vector<2x128xf32>
    %cst = arith.constant 2.000000e+00 : f32
    %33 = vector.broadcast %cst : f32 to vector<2x128xf32>
    %34 = arith.subf %33, %32 : vector<2x128xf32>
    %35 = arith.mulf %31, %34 : vector<2x128xf32>
    %36 = arith.mulf %21, %35 : vector<2x128xf32>
    %c0_i32_16 = arith.constant 0 : i32
    %37 = vector.broadcast %c0_i32_16 : i32 to vector<2x128xi32>
    %38 = arith.cmpi eq, %4, %37 : vector<2x128xi32>
    %39 = arith.extui %38 : vector<2x128xi1> to vector<2x128xi32>
    %40 = arith.sitofp %39 : vector<2x128xi32> to vector<2x128xf32>
    %c0_17 = arith.constant 0 : index
    %c0_18 = arith.constant 0 : index
    %c0_19 = arith.constant 0 : index
    %c0_20 = arith.constant 0 : index
    %41 = vector.load %arg5[%c0_17, %c0_18, %c0_19, %c0_20] : memref<1x1x4x128xf32, #tpu.memory_space<vmem>>, vector<1x1x1x128xf32>
    %42 = vector.shape_cast %41 : vector<1x1x1x128xf32> to vector<1x128xf32>
    %43 = arith.mulf %36, %40 : vector<2x128xf32>
    %cst_21 = arith.constant dense<0.000000e+00> : vector<128xf32>
    %44 = vector.multi_reduction <add>, %43, %cst_21 [0] : vector<2x128xf32> to vector<128xf32>
    %45 = vector.shape_cast %44 : vector<128xf32> to vector<1x128xf32>
    %46 = arith.addf %42, %45 : vector<1x128xf32>
    %c0_22 = arith.constant 0 : index
    %c0_23 = arith.constant 0 : index
    %c0_24 = arith.constant 0 : index
    %c0_25 = arith.constant 0 : index
    %47 = vector.load %arg5[%c0_22, %c0_23, %c0_24, %c0_25] : memref<1x1x4x128xf32, #tpu.memory_space<vmem>>, vector<1x1x1x128xf32>
    %48 = vector.shape_cast %47 : vector<1x1x1x128xf32> to vector<1x128xf32>
    %49 = vector.shape_cast %46 : vector<1x128xf32> to vector<1x1x1x128xf32>
    tpu.vector_store %arg5[%c0_22, %c0_23, %c0_24, %c0_25], %49 {strides = array<i32>} : memref<1x1x4x128xf32, #tpu.memory_space<vmem>>, vector<1x1x1x128xf32>,
    %c0_26 = arith.constant 0 : index
    %c0_27 = arith.constant 0 : index
    %c0_28 = arith.constant 0 : index
    %c0_29 = arith.constant 0 : index
    %50 = vector.load %arg6[%c0_26, %c0_27, %c0_28, %c0_29] : memref<1x1x4x128xf32, #tpu.memory_space<vmem>>, vector<1x1x1x128xf32>
    %51 = vector.shape_cast %50 : vector<1x1x1x128xf32> to vector<1x128xf32>
    %cst_30 = arith.constant dense<0.000000e+00> : vector<128xf32>
    %52 = vector.multi_reduction <add>, %36, %cst_30 [0] : vector<2x128xf32> to vector<128xf32>
    %53 = vector.shape_cast %52 : vector<128xf32> to vector<1x128xf32>
    %54 = arith.addf %51, %53 : vector<1x128xf32>
    %c0_31 = arith.constant 0 : index
    %c0_32 = arith.constant 0 : index
    %c0_33 = arith.constant 0 : index
    %c0_34 = arith.constant 0 : index
    %55 = vector.load %arg6[%c0_31, %c0_32, %c0_33, %c0_34] : memref<1x1x4x128xf32, #tpu.memory_space<vmem>>, vector<1x1x1x128xf32>
    %56 = vector.shape_cast %55 : vector<1x1x1x128xf32> to vector<1x128xf32>
    %57 = vector.shape_cast %54 : vector<1x128xf32> to vector<1x1x1x128xf32>
    tpu.vector_store %arg6[%c0_31, %c0_32, %c0_33, %c0_34], %57 {strides = array<i32>} : memref<1x1x4x128xf32, #tpu.memory_space<vmem>>, vector<1x1x1x128xf32>,
    %c0_35 = arith.constant 0 : index
    %c0_36 = arith.constant 0 : index
    %c0_37 = arith.constant 0 : index
    %c0_38 = arith.constant 0 : index
    %58 = vector.load %arg7[%c0_35, %c0_36, %c0_37, %c0_38] : memref<1x1x4x128xf32, #tpu.memory_space<vmem>>, vector<1x1x1x128xf32>
    %59 = vector.shape_cast %58 : vector<1x1x1x128xf32> to vector<1x128xf32>
    %cst_39 = arith.constant dense<0.000000e+00> : vector<128xf32>
    %60 = vector.multi_reduction <add>, %40, %cst_39 [0] : vector<2x128xf32> to vector<128xf32>
    %61 = vector.shape_cast %60 : vector<128xf32> to vector<1x128xf32>
    %62 = arith.addf %59, %61 : vector<1x128xf32>
    %c0_40 = arith.constant 0 : index
    %c0_41 = arith.constant 0 : index
    %c0_42 = arith.constant 0 : index
    %c0_43 = arith.constant 0 : index
    %63 = vector.load %arg7[%c0_40, %c0_41, %c0_42, %c0_43] : memref<1x1x4x128xf32, #tpu.memory_space<vmem>>, vector<1x1x1x128xf32>
    %64 = vector.shape_cast %63 : vector<1x1x1x128xf32> to vector<1x128xf32>
    %65 = vector.shape_cast %62 : vector<1x128xf32> to vector<1x1x1x128xf32>
    tpu.vector_store %arg7[%c0_40, %c0_41, %c0_42, %c0_43], %65 {strides = array<i32>} : memref<1x1x4x128xf32, #tpu.memory_space<vmem>>, vector<1x1x1x128xf32>,
    %66 = arith.mulf %23, %35 : vector<2x128xf32>
    %c1_i32 = arith.constant 1 : i32
    %67 = vector.broadcast %c1_i32 : i32 to vector<2x128xi32>
    %68 = arith.cmpi eq, %4, %67 : vector<2x128xi32>
    %69 = arith.extui %68 : vector<2x128xi1> to vector<2x128xi32>
    %70 = arith.sitofp %69 : vector<2x128xi32> to vector<2x128xf32>
    %c0_44 = arith.constant 0 : index
    %c0_45 = arith.constant 0 : index
    %c1_46 = arith.constant 1 : index
    %c0_47 = arith.constant 0 : index
    %71 = vector.load %arg5[%c0_44, %c0_45, %c1_46, %c0_47] : memref<1x1x4x128xf32, #tpu.memory_space<vmem>>, vector<1x1x1x128xf32>
    %72 = vector.shape_cast %71 : vector<1x1x1x128xf32> to vector<1x128xf32>
    %73 = arith.mulf %66, %70 : vector<2x128xf32>
    %cst_48 = arith.constant dense<0.000000e+00> : vector<128xf32>
    %74 = vector.multi_reduction <add>, %73, %cst_48 [0] : vector<2x128xf32> to vector<128xf32>
    %75 = vector.shape_cast %74 : vector<128xf32> to vector<1x128xf32>
    %76 = arith.addf %72, %75 : vector<1x128xf32>
    %c0_49 = arith.constant 0 : index
    %c0_50 = arith.constant 0 : index
    %c1_51 = arith.constant 1 : index
    %c0_52 = arith.constant 0 : index
    %77 = vector.load %arg5[%c0_49, %c0_50, %c1_51, %c0_52] : memref<1x1x4x128xf32, #tpu.memory_space<vmem>>, vector<1x1x1x128xf32>
    %78 = vector.shape_cast %77 : vector<1x1x1x128xf32> to vector<1x128xf32>
    %79 = vector.shape_cast %76 : vector<1x128xf32> to vector<1x1x1x128xf32>
    tpu.vector_store %arg5[%c0_49, %c0_50, %c1_51, %c0_52], %79 {strides = array<i32>} : memref<1x1x4x128xf32, #tpu.memory_space<vmem>>, vector<1x1x1x128xf32>,
    %c0_53 = arith.constant 0 : index
    %c0_54 = arith.constant 0 : index
    %c1_55 = arith.constant 1 : index
    %c0_56 = arith.constant 0 : index
    %80 = vector.load %arg6[%c0_53, %c0_54, %c1_55, %c0_56] : memref<1x1x4x128xf32, #tpu.memory_space<vmem>>, vector<1x1x1x128xf32>
    %81 = vector.shape_cast %80 : vector<1x1x1x128xf32> to vector<1x128xf32>
    %cst_57 = arith.constant dense<0.000000e+00> : vector<128xf32>
    %82 = vector.multi_reduction <add>, %66, %cst_57 [0] : vector<2x128xf32> to vector<128xf32>
    %83 = vector.shape_cast %82 : vector<128xf32> to vector<1x128xf32>
    %84 = arith.addf %81, %83 : vector<1x128xf32>
    %c0_58 = arith.constant 0 : index
    %c0_59 = arith.constant 0 : index
    %c1_60 = arith.constant 1 : index
    %c0_61 = arith.constant 0 : index
    %85 = vector.load %arg6[%c0_58, %c0_59, %c1_60, %c0_61] : memref<1x1x4x128xf32, #tpu.memory_space<vmem>>, vector<1x1x1x128xf32>
    %86 = vector.shape_cast %85 : vector<1x1x1x128xf32> to vector<1x128xf32>
    %87 = vector.shape_cast %84 : vector<1x128xf32> to vector<1x1x1x128xf32>
    tpu.vector_store %arg6[%c0_58, %c0_59, %c1_60, %c0_61], %87 {strides = array<i32>} : memref<1x1x4x128xf32, #tpu.memory_space<vmem>>, vector<1x1x1x128xf32>,
    %c0_62 = arith.constant 0 : index
    %c0_63 = arith.constant 0 : index
    %c1_64 = arith.constant 1 : index
    %c0_65 = arith.constant 0 : index
    %88 = vector.load %arg7[%c0_62, %c0_63, %c1_64, %c0_65] : memref<1x1x4x128xf32, #tpu.memory_space<vmem>>, vector<1x1x1x128xf32>
    %89 = vector.shape_cast %88 : vector<1x1x1x128xf32> to vector<1x128xf32>
    %cst_66 = arith.constant dense<0.000000e+00> : vector<128xf32>
    %90 = vector.multi_reduction <add>, %70, %cst_66 [0] : vector<2x128xf32> to vector<128xf32>
    %91 = vector.shape_cast %90 : vector<128xf32> to vector<1x128xf32>
    %92 = arith.addf %89, %91 : vector<1x128xf32>
    %c0_67 = arith.constant 0 : index
    %c0_68 = arith.constant 0 : index
    %c1_69 = arith.constant 1 : index
    %c0_70 = arith.constant 0 : index
    %93 = vector.load %arg7[%c0_67, %c0_68, %c1_69, %c0_70] : memref<1x1x4x128xf32, #tpu.memory_space<vmem>>, vector<1x1x1x128xf32>
    %94 = vector.shape_cast %93 : vector<1x1x1x128xf32> to vector<1x128xf32>
    %95 = vector.shape_cast %92 : vector<1x128xf32> to vector<1x1x1x128xf32>
    tpu.vector_store %arg7[%c0_67, %c0_68, %c1_69, %c0_70], %95 {strides = array<i32>} : memref<1x1x4x128xf32, #tpu.memory_space<vmem>>, vector<1x1x1x128xf32>,
    %96 = arith.mulf %26, %35 : vector<2x128xf32>
    %c2_i32 = arith.constant 2 : i32
    %97 = vector.broadcast %c2_i32 : i32 to vector<2x128xi32>
    %98 = arith.cmpi eq, %4, %97 : vector<2x128xi32>
    %99 = arith.extui %98 : vector<2x128xi1> to vector<2x128xi32>
    %100 = arith.sitofp %99 : vector<2x128xi32> to vector<2x128xf32>
    %c0_71 = arith.constant 0 : index
    %c0_72 = arith.constant 0 : index
    %c2_73 = arith.constant 2 : index
    %c0_74 = arith.constant 0 : index
    %101 = vector.load %arg5[%c0_71, %c0_72, %c2_73, %c0_74] : memref<1x1x4x128xf32, #tpu.memory_space<vmem>>, vector<1x1x1x128xf32>
    %102 = vector.shape_cast %101 : vector<1x1x1x128xf32> to vector<1x128xf32>
    %103 = arith.mulf %96, %100 : vector<2x128xf32>
    %cst_75 = arith.constant dense<0.000000e+00> : vector<128xf32>
    %104 = vector.multi_reduction <add>, %103, %cst_75 [0] : vector<2x128xf32> to vector<128xf32>
    %105 = vector.shape_cast %104 : vector<128xf32> to vector<1x128xf32>
    %106 = arith.addf %102, %105 : vector<1x128xf32>
    %c0_76 = arith.constant 0 : index
    %c0_77 = arith.constant 0 : index
    %c2_78 = arith.constant 2 : index
    %c0_79 = arith.constant 0 : index
    %107 = vector.load %arg5[%c0_76, %c0_77, %c2_78, %c0_79] : memref<1x1x4x128xf32, #tpu.memory_space<vmem>>, vector<1x1x1x128xf32>
    %108 = vector.shape_cast %107 : vector<1x1x1x128xf32> to vector<1x128xf32>
    %109 = vector.shape_cast %106 : vector<1x128xf32> to vector<1x1x1x128xf32>
    tpu.vector_store %arg5[%c0_76, %c0_77, %c2_78, %c0_79], %109 {strides = array<i32>} : memref<1x1x4x128xf32, #tpu.memory_space<vmem>>, vector<1x1x1x128xf32>,
    %c0_80 = arith.constant 0 : index
    %c0_81 = arith.constant 0 : index
    %c2_82 = arith.constant 2 : index
    %c0_83 = arith.constant 0 : index
    %110 = vector.load %arg6[%c0_80, %c0_81, %c2_82, %c0_83] : memref<1x1x4x128xf32, #tpu.memory_space<vmem>>, vector<1x1x1x128xf32>
    %111 = vector.shape_cast %110 : vector<1x1x1x128xf32> to vector<1x128xf32>
    %cst_84 = arith.constant dense<0.000000e+00> : vector<128xf32>
    %112 = vector.multi_reduction <add>, %96, %cst_84 [0] : vector<2x128xf32> to vector<128xf32>
    %113 = vector.shape_cast %112 : vector<128xf32> to vector<1x128xf32>
    %114 = arith.addf %111, %113 : vector<1x128xf32>
    %c0_85 = arith.constant 0 : index
    %c0_86 = arith.constant 0 : index
    %c2_87 = arith.constant 2 : index
    %c0_88 = arith.constant 0 : index
    %115 = vector.load %arg6[%c0_85, %c0_86, %c2_87, %c0_88] : memref<1x1x4x128xf32, #tpu.memory_space<vmem>>, vector<1x1x1x128xf32>
    %116 = vector.shape_cast %115 : vector<1x1x1x128xf32> to vector<1x128xf32>
    %117 = vector.shape_cast %114 : vector<1x128xf32> to vector<1x1x1x128xf32>
    tpu.vector_store %arg6[%c0_85, %c0_86, %c2_87, %c0_88], %117 {strides = array<i32>} : memref<1x1x4x128xf32, #tpu.memory_space<vmem>>, vector<1x1x1x128xf32>,
    %c0_89 = arith.constant 0 : index
    %c0_90 = arith.constant 0 : index
    %c2_91 = arith.constant 2 : index
    %c0_92 = arith.constant 0 : index
    %118 = vector.load %arg7[%c0_89, %c0_90, %c2_91, %c0_92] : memref<1x1x4x128xf32, #tpu.memory_space<vmem>>, vector<1x1x1x128xf32>
    %119 = vector.shape_cast %118 : vector<1x1x1x128xf32> to vector<1x128xf32>
    %cst_93 = arith.constant dense<0.000000e+00> : vector<128xf32>
    %120 = vector.multi_reduction <add>, %100, %cst_93 [0] : vector<2x128xf32> to vector<128xf32>
    %121 = vector.shape_cast %120 : vector<128xf32> to vector<1x128xf32>
    %122 = arith.addf %119, %121 : vector<1x128xf32>
    %c0_94 = arith.constant 0 : index
    %c0_95 = arith.constant 0 : index
    %c2_96 = arith.constant 2 : index
    %c0_97 = arith.constant 0 : index
    %123 = vector.load %arg7[%c0_94, %c0_95, %c2_96, %c0_97] : memref<1x1x4x128xf32, #tpu.memory_space<vmem>>, vector<1x1x1x128xf32>
    %124 = vector.shape_cast %123 : vector<1x1x1x128xf32> to vector<1x128xf32>
    %125 = vector.shape_cast %122 : vector<1x128xf32> to vector<1x1x1x128xf32>
    tpu.vector_store %arg7[%c0_94, %c0_95, %c2_96, %c0_97], %125 {strides = array<i32>} : memref<1x1x4x128xf32, #tpu.memory_space<vmem>>, vector<1x1x1x128xf32>,
    %126 = arith.mulf %29, %35 : vector<2x128xf32>
    %c3_i32 = arith.constant 3 : i32
    %127 = vector.broadcast %c3_i32 : i32 to vector<2x128xi32>
    %128 = arith.cmpi eq, %4, %127 : vector<2x128xi32>
    %129 = arith.extui %128 : vector<2x128xi1> to vector<2x128xi32>
    %130 = arith.sitofp %129 : vector<2x128xi32> to vector<2x128xf32>
    %c0_98 = arith.constant 0 : index
    %c0_99 = arith.constant 0 : index
    %c3_100 = arith.constant 3 : index
    %c0_101 = arith.constant 0 : index
    %131 = vector.load %arg5[%c0_98, %c0_99, %c3_100, %c0_101] : memref<1x1x4x128xf32, #tpu.memory_space<vmem>>, vector<1x1x1x128xf32>
    %132 = vector.shape_cast %131 : vector<1x1x1x128xf32> to vector<1x128xf32>
    %133 = arith.mulf %126, %130 : vector<2x128xf32>
    %cst_102 = arith.constant dense<0.000000e+00> : vector<128xf32>
    %134 = vector.multi_reduction <add>, %133, %cst_102 [0] : vector<2x128xf32> to vector<128xf32>
    %135 = vector.shape_cast %134 : vector<128xf32> to vector<1x128xf32>
    %136 = arith.addf %132, %135 : vector<1x128xf32>
    %c0_103 = arith.constant 0 : index
    %c0_104 = arith.constant 0 : index
    %c3_105 = arith.constant 3 : index
    %c0_106 = arith.constant 0 : index
    %137 = vector.load %arg5[%c0_103, %c0_104, %c3_105, %c0_106] : memref<1x1x4x128xf32, #tpu.memory_space<vmem>>, vector<1x1x1x128xf32>
    %138 = vector.shape_cast %137 : vector<1x1x1x128xf32> to vector<1x128xf32>
    %139 = vector.shape_cast %136 : vector<1x128xf32> to vector<1x1x1x128xf32>
    tpu.vector_store %arg5[%c0_103, %c0_104, %c3_105, %c0_106], %139 {strides = array<i32>} : memref<1x1x4x128xf32, #tpu.memory_space<vmem>>, vector<1x1x1x128xf32>,
    %c0_107 = arith.constant 0 : index
    %c0_108 = arith.constant 0 : index
    %c3_109 = arith.constant 3 : index
    %c0_110 = arith.constant 0 : index
    %140 = vector.load %arg6[%c0_107, %c0_108, %c3_109, %c0_110] : memref<1x1x4x128xf32, #tpu.memory_space<vmem>>, vector<1x1x1x128xf32>
    %141 = vector.shape_cast %140 : vector<1x1x1x128xf32> to vector<1x128xf32>
    %cst_111 = arith.constant dense<0.000000e+00> : vector<128xf32>
    %142 = vector.multi_reduction <add>, %126, %cst_111 [0] : vector<2x128xf32> to vector<128xf32>
    %143 = vector.shape_cast %142 : vector<128xf32> to vector<1x128xf32>
    %144 = arith.addf %141, %143 : vector<1x128xf32>
    %c0_112 = arith.constant 0 : index
    %c0_113 = arith.constant 0 : index
    %c3_114 = arith.constant 3 : index
    %c0_115 = arith.constant 0 : index
    %145 = vector.load %arg6[%c0_112, %c0_113, %c3_114, %c0_115] : memref<1x1x4x128xf32, #tpu.memory_space<vmem>>, vector<1x1x1x128xf32>
    %146 = vector.shape_cast %145 : vector<1x1x1x128xf32> to vector<1x128xf32>
    %147 = vector.shape_cast %144 : vector<1x128xf32> to vector<1x1x1x128xf32>
    tpu.vector_store %arg6[%c0_112, %c0_113, %c3_114, %c0_115], %147 {strides = array<i32>} : memref<1x1x4x128xf32, #tpu.memory_space<vmem>>, vector<1x1x1x128xf32>,
    %c0_116 = arith.constant 0 : index
    %c0_117 = arith.constant 0 : index
    %c3_118 = arith.constant 3 : index
    %c0_119 = arith.constant 0 : index
    %148 = vector.load %arg7[%c0_116, %c0_117, %c3_118, %c0_119] : memref<1x1x4x128xf32, #tpu.memory_space<vmem>>, vector<1x1x1x128xf32>
    %149 = vector.shape_cast %148 : vector<1x1x1x128xf32> to vector<1x128xf32>
    %cst_120 = arith.constant dense<0.000000e+00> : vector<128xf32>
    %150 = vector.multi_reduction <add>, %130, %cst_120 [0] : vector<2x128xf32> to vector<128xf32>
    %151 = vector.shape_cast %150 : vector<128xf32> to vector<1x128xf32>
    %152 = arith.addf %149, %151 : vector<1x128xf32>
    %c0_121 = arith.constant 0 : index
    %c0_122 = arith.constant 0 : index
    %c3_123 = arith.constant 3 : index
    %c0_124 = arith.constant 0 : index
    %153 = vector.load %arg7[%c0_121, %c0_122, %c3_123, %c0_124] : memref<1x1x4x128xf32, #tpu.memory_space<vmem>>, vector<1x1x1x128xf32>
    %154 = vector.shape_cast %153 : vector<1x1x1x128xf32> to vector<1x128xf32>
    %155 = vector.shape_cast %152 : vector<1x128xf32> to vector<1x1x1x128xf32>
    tpu.vector_store %arg7[%c0_121, %c0_122, %c3_123, %c0_124], %155 {strides = array<i32>} : memref<1x1x4x128xf32, #tpu.memory_space<vmem>>, vector<1x1x1x128xf32>,
    return
  }
  func.func @transform_0(%arg0: i32, %arg1: i32, %arg2: i32) -> (i32, i32, i32, i32) {
    %c1_i32 = arith.constant 1 : i32
    %0 = arith.muli %arg1, %c1_i32 : i32
    %1 = arith.addi %0, %arg2 : i32
    %c0_i32 = arith.constant 0 : i32
    %c0_i32_0 = arith.constant 0 : i32
    %c0_i32_1 = arith.constant 0 : i32
    return %arg0, %c0_i32, %1, %c0_i32_0 : i32, i32, i32, i32
  }
  func.func @transform_1(%arg0: i32, %arg1: i32, %arg2: i32) -> (i32, i32, i32) {
    %c1_i32 = arith.constant 1 : i32
    %0 = arith.muli %arg1, %c1_i32 : i32
    %1 = arith.addi %0, %arg2 : i32
    %c0_i32 = arith.constant 0 : i32
    %c0_i32_0 = arith.constant 0 : i32
    return %arg0, %1, %c0_i32 : i32, i32, i32
  }
  func.func @transform_2(%arg0: i32, %arg1: i32, %arg2: i32) -> (i32, i32, i32, i32) {
    %c0_i32 = arith.constant 0 : i32
    %c0_i32_0 = arith.constant 0 : i32
    %c0_i32_1 = arith.constant 0 : i32
    return %arg0, %arg1, %c0_i32, %c0_i32_0 : i32, i32, i32, i32
  }
  func.func @transform_3(%arg0: i32, %arg1: i32, %arg2: i32) -> (i32, i32, i32, i32) {
    %c0_i32 = arith.constant 0 : i32
    %c0_i32_0 = arith.constant 0 : i32
    %c0_i32_1 = arith.constant 0 : i32
    return %arg0, %arg1, %c0_i32, %c0_i32_0 : i32, i32, i32, i32
  }
  func.func @transform_4(%arg0: i32, %arg1: i32, %arg2: i32) -> (i32, i32, i32, i32) {
    %c0_i32 = arith.constant 0 : i32
    %c0_i32_0 = arith.constant 0 : i32
    %c0_i32_1 = arith.constant 0 : i32
    return %arg0, %arg1, %c0_i32, %c0_i32_0 : i32, i32, i32, i32
  }
}

</mosaic_0001>

<llo_original>
// kernel: _tversky_loss_impl.1
$region0: #{_tversky_loss_impl.1}
  #allocation0 [shape = 'u32[]', space=smem, size = 0x4, offset = 0x4, fixed_abs, tag = 'smem constant byte address 0x4 - core index']
  #allocation1 [shape = 'u32[144,128]{1,0:T(1,128)}', space=vmem, size = 0x12000, scoped, tag = 'internal scratch']
  %s0 = inlined_call_operand.vmem [shape: bf16[2,4,2,128], index: 0, kind: input, shape index: {}]
  %s1 = inlined_call_operand.vmem [shape: s32[2,2,128], index: 1, kind: input, shape index: {}]
  %s2 = inlined_call_operand.vmem [shape: f32[2,1,4,128], index: 2, kind: output, shape index: {0}]
  %s3 = inlined_call_operand.vmem [shape: f32[2,1,4,128], index: 3, kind: output, shape index: {1}]
  %s4 = inlined_call_operand.vmem [shape: f32[2,1,4,128], index: 4, kind: output, shape index: {2}]
  %5 = xla_tuple %s2, %s3, %s4
  %s6 = sld [smem:[#allocation0]]
  $region61: #{_tversky_loss_impl.1} parent=0
    _
  %s8 = ssub.s32 1, %s6
  %s9 = scalar_select 0, %s8, %s6
  loop: start=0, step=1, limit=4
  $region2: #{_tversky_loss_impl.1} parent=0 // loop_pre_header
    _
  $region3: #{_tversky_loss_impl.1} parent=0 // loop_header
    %s11 = sphi 0, %s15
    %p12 = scmp.ge.s32.totalorder %s11, 4
    %s18 = sphi 0, %s37
    %s19 = sphi 0, %s33
    %s20 = sphi 0, %s29
    %s21 = sphi 0, %s18
    %s22 = sphi 0, %s19
    %s23 = sphi 0, %s20
    %s24 = sphi 0, %s21
    %s25 = sphi 0, %s22
    %s26 = sphi 0, %s23
    %s44 = sphi 0, %s46
    %s47 = sphi 0, %s44
    %s48 = sphi 0, %s47
    %s64 = sphi 0, %s48
    %s74 = sphi 0, %s76
    %s77 = sphi 0, %s74
    %s78 = sphi 0, %s77
    %s94 = sphi 0, %s78
    %s102 = sphi 0, %s104
    %s105 = sphi 0, %s102
    %s106 = sphi 0, %s105
    %s122 = sphi 0, %s106
    %s130 = sphi 0, %s132
    %s133 = sphi 0, %s130
    %s134 = sphi 0, %s133
    %s150 = sphi 0, %s134
    %s158 = sphi 0, %s160
    %s161 = sphi 0, %s158
    %s162 = sphi 0, %s161
    %s178 = sphi 0, %s162
  $region4: #{_tversky_loss_impl.1} parent=0 // loop_header_branch
    %14 = sbr.rel (%p12) target = $region8
  $region5: #{_tversky_loss_impl.1} parent=0 // loop_body
    %s16 = ssub.s32 %s11, 1
    %s17 = ssub.s32 %s11, 2
    %s27 = sadd.s32 1, %s20
    %p28 = scmp.ge.s32.totalorder %s27, 1
    %s29 = scalar_select %p28, 0, %s27
    %s30 = sadd.s32 1, %s19
    %s31 = scalar_select %p28, %s30, %s19
    %p32 = scmp.ge.s32.totalorder %s31, 1
    %s33 = scalar_select %p32, 0, %s31
    %s34 = sadd.s32 1, %s18
    %s35 = scalar_select %p32, %s34, %s18
    %p36 = scmp.ge.s32.totalorder %s35, 2
    %s37 = scalar_select %p36, 0, %s35
    %s38 = sadd.s32 %s19, %s20
    %s39 = sadd.s32 %s33, %s29
    %s40 = ssub.s32 %s18, %s37
    %s41 = ssub.s32 %s38, %s39
    %s42 = sor.u32 %s40, %s41
    %p43 = scmp.eq.s32.totalorder %s42, 0
    %s45 = sadd.s32 %s44, 1
    %s46 = scalar_select %p43, %s44, %s45
    %p49 = pneg %p43
    %p50 = scmp.eq.s32.totalorder %s11, 1
    %p51 = por %p49, %p50
    %p52 = scmp.ne.s32.totalorder %s44, %s47
    %p53 = scmp.eq.s32.totalorder %s11, 0
    %p54 = por %p52, %p53
    %p55 = scmp.ne.s32.totalorder %s44, %s47
    %p56 = scmp.eq.s32.totalorder %s16, 1
    %p57 = por %p55, %p56
    %p58 = scmp.ne.s32.totalorder %s47, %s48
    %p59 = scmp.eq.s32.totalorder %s16, 0
    %p60 = por %p58, %p59
    %p61 = scmp.ne.s32.totalorder %s47, %s48
    %p62 = scmp.eq.s32.totalorder %s17, 1
    %p63 = por %p61, %p62
    %p65 = scmp.ne.s32.totalorder %s48, %s64
    %p66 = scmp.eq.s32.totalorder %s17, 0
    %p67 = por %p65, %p66
    %s68 = sadd.s32 %s19, %s20
    %s69 = sadd.s32 %s33, %s29
    %s70 = ssub.s32 %s18, %s37
    %s71 = ssub.s32 %s68, %s69
    %s72 = sor.u32 %s70, %s71
    %p73 = scmp.eq.s32.totalorder %s72, 0
    %s75 = sadd.s32 %s74, 1
    %s76 = scalar_select %p73, %s74, %s75
    %p79 = pneg %p73
    %p80 = scmp.eq.s32.totalorder %s11, 1
    %p81 = por %p79, %p80
    %p82 = scmp.ne.s32.totalorder %s74, %s77
    %p83 = scmp.eq.s32.totalorder %s11, 0
    %p84 = por %p82, %p83
    %p85 = scmp.ne.s32.totalorder %s74, %s77
    %p86 = scmp.eq.s32.totalorder %s16, 1
    %p87 = por %p85, %p86
    %p88 = scmp.ne.s32.totalorder %s77, %s78
    %p89 = scmp.eq.s32.totalorder %s16, 0
    %p90 = por %p88, %p89
    %p91 = scmp.ne.s32.totalorder %s77, %s78
    %p92 = scmp.eq.s32.totalorder %s17, 1
    %p93 = por %p91, %p92
    %p95 = scmp.ne.s32.totalorder %s78, %s94
    %p96 = scmp.eq.s32.totalorder %s17, 0
    %p97 = por %p95, %p96
    %s98 = ssub.s32 %s18, %s37
    %s99 = ssub.s32 %s19, %s33
    %s100 = sor.u32 %s98, %s99
    %p101 = scmp.eq.s32.totalorder %s100, 0
    %s103 = sadd.s32 %s102, 1
    %s104 = scalar_select %p101, %s102, %s103
    %p107 = pneg %p101
    %p108 = scmp.eq.s32.totalorder %s11, 1
    %p109 = por %p107, %p108
    %p110 = scmp.ne.s32.totalorder %s102, %s105
    %p111 = scmp.eq.s32.totalorder %s11, 0
    %p112 = por %p110, %p111
    %p113 = scmp.ne.s32.totalorder %s102, %s105
    %p114 = scmp.eq.s32.totalorder %s16, 1
    %p115 = por %p113, %p114
    %p116 = scmp.ne.s32.totalorder %s105, %s106
    %p117 = scmp.eq.s32.totalorder %s16, 0
    %p118 = por %p116, %p117
    %p119 = scmp.ne.s32.totalorder %s105, %s106
    %p120 = scmp.eq.s32.totalorder %s17, 1
    %p121 = por %p119, %p120
    %p123 = scmp.ne.s32.totalorder %s106, %s122
    %p124 = scmp.eq.s32.totalorder %s17, 0
    %p125 = por %p123, %p124
    %s126 = ssub.s32 %s18, %s37
    %s127 = ssub.s32 %s19, %s33
    %s128 = sor.u32 %s126, %s127
    %p129 = scmp.eq.s32.totalorder %s128, 0
    %s131 = sadd.s32 %s130, 1
    %s132 = scalar_select %p129, %s130, %s131
    %p135 = pneg %p129
    %p136 = scmp.eq.s32.totalorder %s11, 1
    %p137 = por %p135, %p136
    %p138 = scmp.ne.s32.totalorder %s130, %s133
    %p139 = scmp.eq.s32.totalorder %s11, 0
    %p140 = por %p138, %p139
    %p141 = scmp.ne.s32.totalorder %s130, %s133
    %p142 = scmp.eq.s32.totalorder %s16, 1
    %p143 = por %p141, %p142
    %p144 = scmp.ne.s32.totalorder %s133, %s134
    %p145 = scmp.eq.s32.totalorder %s16, 0
    %p146 = por %p144, %p145
    %p147 = scmp.ne.s32.totalorder %s133, %s134
    %p148 = scmp.eq.s32.totalorder %s17, 1
    %p149 = por %p147, %p148
    %p151 = scmp.ne.s32.totalorder %s134, %s150
    %p152 = scmp.eq.s32.totalorder %s17, 0
    %p153 = por %p151, %p152
    %s154 = ssub.s32 %s18, %s37
    %s155 = ssub.s32 %s19, %s33
    %s156 = sor.u32 %s154, %s155
    %p157 = scmp.eq.s32.totalorder %s156, 0
    %s159 = sadd.s32 %s158, 1
    %s160 = scalar_select %p157, %s158, %s159
    %p163 = pneg %p157
    %p164 = scmp.eq.s32.totalorder %s11, 1
    %p165 = por %p163, %p164
    %p166 = scmp.ne.s32.totalorder %s158, %s161
    %p167 = scmp.eq.s32.totalorder %s11, 0
    %p168 = por %p166, %p167
    %p169 = scmp.ne.s32.totalorder %s158, %s161
    %p170 = scmp.eq.s32.totalorder %s16, 1
    %p171 = por %p169, %p170
    %p172 = scmp.ne.s32.totalorder %s161, %s162
    %p173 = scmp.eq.s32.totalorder %s16, 0
    %p174 = por %p172, %p173
    %p175 = scmp.ne.s32.totalorder %s161, %s162
    %p176 = scmp.eq.s32.totalorder %s17, 1
    %p177 = por %p175, %p176
    %p179 = scmp.ne.s32.totalorder %s162, %s178
    %p180 = scmp.eq.s32.totalorder %s17, 0
    %p181 = por %p179, %p180
    %p182 = scmp.le.s32.totalorder 1, %s11
    %p183 = scmp.lt.s32.totalorder %s11, 3
    %p184 = pnand %p182, %p183
    %p185 = pneg %p184
    // Predicated region
    $region9: #{_tversky_loss_impl.1} parent=5 // pred_check
      _
    $region10: #{_tversky_loss_impl.1} parent=5 // pred_check_branch
      %187 = sbr.rel (%p184) target = $region12
    $region11: #{_tversky_loss_impl.1} parent=5 // pred_region
      %s188 = ssub.s32 %s11, 1
    $region12: #{_tversky_loss_impl.1} parent=5 // pred_fallthru
      _
    %p189 = scmp.lt.s32.totalorder %s11, 2
    // Predicated region
    $region13: #{_tversky_loss_impl.1} parent=5 // pred_check
      %p190 = pneg %p189
    $region14: #{_tversky_loss_impl.1} parent=5 // pred_check_branch
      %192 = sbr.rel (%p190) target = $region16
    $region15: #{_tversky_loss_impl.1} parent=5 // pred_region
      // Predicated region
      $region17: #{_tversky_loss_impl.1} parent=15 // pred_check
        %p193 = pneg %p54
      $region18: #{_tversky_loss_impl.1} parent=15 // pred_check_branch
        %195 = sbr.rel (%p193) target = $region20
      $region19: #{_tversky_loss_impl.1} parent=15 // pred_region
        %s196 = sadd.s32 %s19, %s20
        %p197 = scmp.lt.s32.totalorder %s18, 1
        %s198 = scalar_select %p197, %s18, 1
        %p199 = scmp.lt.s32.totalorder %s196, 0
        %s200 = scalar_select %p199, %s196, 0
        %s201 = smul.addr %s198, 4
        %s202 = sadd.s32 %s200, %s201
        %s203 = scalar_lea.vmem %s0, %s202
        %s204 = sadd.s32 %s19, %s20
      $region20: #{_tversky_loss_impl.1} parent=15 // pred_fallthru
        _
      // Predicated region
      $region21: #{_tversky_loss_impl.1} parent=15 // pred_check
        %p205 = pneg %p84
      $region22: #{_tversky_loss_impl.1} parent=15 // pred_check_branch
        %207 = sbr.rel (%p205) target = $region24
      $region23: #{_tversky_loss_impl.1} parent=15 // pred_region
        %s208 = sadd.s32 %s19, %s20
        %p209 = scmp.lt.s32.totalorder %s18, 1
        %s210 = scalar_select %p209, %s18, 1
        %p211 = scmp.lt.s32.totalorder %s208, 0
        %s212 = scalar_select %p211, %s208, 0
        %s213 = sadd.s32 %s212, %s210
        %s214 = smul.addr %s213, 2
        %s215 = scalar_lea.vmem %s1, %s214
        %s216 = sadd.s32 %s19, %s20
      $region24: #{_tversky_loss_impl.1} parent=15 // pred_fallthru
        _
    $region16: #{_tversky_loss_impl.1} parent=5 // pred_fallthru
      _
    %p217 = scmp.le.s32.totalorder 1, %s11
    %p218 = scmp.lt.s32.totalorder %s11, 3
    %p219 = pnand %p217, %p218
    %p220 = pneg %p219
    // Predicated region
    $region25: #{_tversky_loss_impl.1} parent=5 // pred_check
      _
    $region26: #{_tversky_loss_impl.1} parent=5 // pred_check_branch
      %222 = sbr.rel (%p219) target = $region28
    $region27: #{_tversky_loss_impl.1} parent=5 // pred_region
      %s223 = ssub.s32 %s11, 1
      %s224 = sadd.s32 %s22, %s23
      %p225 = scmp.lt.s32.totalorder %s21, 1
      %s226 = scalar_select %p225, %s21, 1
      %p227 = scmp.lt.s32.totalorder %s224, 0
      %s228 = scalar_select %p227, %s224, 0
      %s229 = smul.addr %s226, 4
      %s230 = sadd.s32 %s228, %s229
      %s231 = scalar_lea.vmem %s0, %s230
      %p232 = pneg %p60
      %p233 = pneg %p57
      %s234 = sadd.s32 %s22, %s23
      %p235 = scmp.lt.s32.totalorder %s21, 1
      %s236 = scalar_select %p235, %s21, 1
      %p237 = scmp.lt.s32.totalorder %s234, 0
      %s238 = scalar_select %p237, %s234, 0
      %s239 = sadd.s32 %s238, %s236
      %s240 = smul.addr %s239, 2
      %s241 = scalar_lea.vmem %s1, %s240
      %p242 = pneg %p90
      %p243 = pneg %p87
      %p244 = pneg %p118
      %p245 = pneg %p115
      %p246 = scmp.lt.s32.totalorder %s21, 1
      %s247 = scalar_select %p246, %s21, 1
      %p248 = scmp.lt.s32.totalorder %s22, 0
      %s249 = scalar_select %p248, %s22, 0
      %s250 = sadd.s32 %s249, %s247
      %s251 = smul.addr %s250, 4
      %s252 = scalar_lea.vmem %s2, %s251
      %p253 = pneg %p146
      %p254 = pneg %p143
      %p255 = scmp.lt.s32.totalorder %s21, 1
      %s256 = scalar_select %p255, %s21, 1
      %p257 = scmp.lt.s32.totalorder %s22, 0
      %s258 = scalar_select %p257, %s22, 0
      %s259 = sadd.s32 %s258, %s256
      %s260 = smul.addr %s259, 4
      %s261 = scalar_lea.vmem %s3, %s260
      %p262 = pneg %p174
      %p263 = pneg %p171
      %p264 = scmp.lt.s32.totalorder %s21, 1
      %s265 = scalar_select %p264, %s21, 1
      %p266 = scmp.lt.s32.totalorder %s22, 0
      %s267 = scalar_select %p266, %s22, 0
      %s268 = sadd.s32 %s267, %s265
      %s269 = smul.addr %s268, 4
      %s270 = scalar_lea.vmem %s4, %s269
      %s271 = sadd.s32 %s22, %s23
      %p272 = scmp.lt.s32.totalorder %s21, 1
      %s273 = scalar_select %p272, %s21, 1
      %p274 = scmp.lt.s32.totalorder %s271, 0
      %s275 = scalar_select %p274, %s271, 0
      %s276 = smul.addr %s273, 4
      %s277 = sadd.s32 %s275, %s276
      %s278 = scalar_lea.vmem %s0, %s277
      %s279 = sadd.s32 %s22, %s23
      %s280 = sadd.s32 %s22, %s23
      %p281 = scmp.lt.s32.totalorder %s21, 1
      %s282 = scalar_select %p281, %s21, 1
      %p283 = scmp.lt.s32.totalorder %s280, 0
      %s284 = scalar_select %p283, %s280, 0
      %s285 = sadd.s32 %s284, %s282
      %s286 = smul.addr %s285, 2
      %s287 = scalar_lea.vmem %s1, %s286
      %s288 = sadd.s32 %s22, %s23
      %p289 = scmp.lt.s32.totalorder %s21, 1
      %s290 = scalar_select %p289, %s21, 1
      %p291 = scmp.lt.s32.totalorder %s22, 0
      %s292 = scalar_select %p291, %s22, 0
      %s293 = sadd.s32 %s292, %s290
      %s294 = smul.addr %s293, 4
      %s295 = scalar_lea.vmem %s2, %s294
      %p296 = scmp.lt.s32.totalorder %s21, 1
      %s297 = scalar_select %p296, %s21, 1
      %p298 = scmp.lt.s32.totalorder %s22, 0
      %s299 = scalar_select %p298, %s22, 0
      %s300 = sadd.s32 %s299, %s297
      %s301 = smul.addr %s300, 4
      %s302 = scalar_lea.vmem %s3, %s301
      %p303 = scmp.lt.s32.totalorder %s21, 1
      %s304 = scalar_select %p303, %s21, 1
      %p305 = scmp.lt.s32.totalorder %s22, 0
      %s306 = scalar_select %p305, %s22, 0
      %s307 = sadd.s32 %s306, %s304
      %s308 = smul.addr %s307, 4
      %s309 = scalar_lea.vmem %s4, %s308
      %p310 = scmp.eq.s32.totalorder %s23, 0
      // Predicated region
      $region29: #{_tversky_loss_impl.1} parent=27 // pred_check
        %p311 = pneg %p310
      $region30: #{_tversky_loss_impl.1} parent=27 // pred_check_branch
        %313 = sbr.rel (%p311) target = $region32
      $region31: #{_tversky_loss_impl.1} parent=27 // pred_region
        %314 = vst [vmem:[%s295] sm:$0xf] 0.0
        %315 = vst [vmem:[%s302] sm:$0xf] 0.0
        %316 = vst [vmem:[%s309] sm:$0xf] 0.0
      $region32: #{_tversky_loss_impl.1} parent=27 // pred_fallthru
        _
      %v317 = vld [vmem:[%s287] sm:$0x3]
      %v318 = vld [vmem:[%s278] sm:$0x1]
      %v319 = vunpack.c.l.bf16 %v318
      %s320 = scalar_lea.vmem %s278, 1
      %v321 = vld [vmem:[%s320] sm:$0x1]
      %v322 = vunpack.c.l.bf16 %v321
      %s323 = scalar_lea.vmem %s278, 2
      %v324 = vld [vmem:[%s323] sm:$0x1]
      %v325 = vunpack.c.l.bf16 %v324
      %s326 = scalar_lea.vmem %s278, 3
      %v327 = vld [vmem:[%s326] sm:$0x1]
      %v328 = vunpack.c.l.bf16 %v327
      %v329 = vmax.f32 %v319, %v322
      %v330 = vmax.f32 %v329, %v325
      %v331 = vmax.f32 %v330, %v328
      %v332 = vsub.f32 %v319, %v331
      %v333 = vmul.f32 %v332, 1.442695
      %v334 = vpow.pop %v333
      %v335 = vsub.f32 %v322, %v331
      %v336 = vmul.f32 %v335, 1.442695
      %v337 = vpow.pop %v336
      %v338 = vadd.f32 %v334, %v337
      %v339 = vsub.f32 %v325, %v331
      %v340 = vmul.f32 %v339, 1.442695
      %v341 = vpow.pop %v340
      %v342 = vadd.f32 %v338, %v341
      %v343 = vsub.f32 %v328, %v331
      %v344 = vmul.f32 %v343, 1.442695
      %v345 = vpow.pop %v344
      %v346 = vadd.f32 %v342, %v345
      %v347 = vrcp.pop %v346
      %v348 = vmul.f32 %v346, %v347
      %v349 = vsub.f32 2.0, %v348
      %v350 = vmul.f32 %v347, %v349
      %v351 = vmul.f32 %v334, %v350
      %vm352 = vcmp.eq.s32.totalorder %v317, 0
      %v353 = vsel %vm352, 1, 0
      %v354 = vcvt.s32.f32 %v353
      %v355 = vld [vmem:[%s295] sm:$0x1]
      %v356 = vmul.f32 %v351, %v354
      %vm357 = vcmask 1041408
      %v358 = vsel %vm357, %v356, 0.0
      %v359 = vrot.slane %v358, 4
      %v360 = vadd.f32 %v358, %v359
      %v361 = vrot.slane %v360, 2
      %v362 = vadd.f32 %v360, %v361
      %v363 = vrot.slane %v362, 1
      %v364 = vadd.f32 %v362, %v363
      %v365 = vadd.f32 %v355, %v364
      %366 = vst [vmem:[%s295] sm:$0x1] %v365
      %v367 = vld [vmem:[%s302] sm:$0x1]
      %v368 = vsel %vm357, %v351, 0.0
      %v369 = vrot.slane %v368, 4
      %v370 = vadd.f32 %v368, %v369
      %v371 = vrot.slane %v370, 2
      %v372 = vadd.f32 %v370, %v371
      %v373 = vrot.slane %v372, 1
      %v374 = vadd.f32 %v372, %v373
      %v375 = vadd.f32 %v367, %v374
      %376 = vst [vmem:[%s302] sm:$0x1] %v375
      %v377 = vld [vmem:[%s309] sm:$0x1]
      %v378 = vsel %vm357, %v354, 0.0
      %v379 = vrot.slane %v378, 4
      %v380 = vadd.f32 %v378, %v379
      %v381 = vrot.slane %v380, 2
      %v382 = vadd.f32 %v380, %v381
      %v383 = vrot.slane %v382, 1
      %v384 = vadd.f32 %v382, %v383
      %v385 = vadd.f32 %v377, %v384
      %386 = vst [vmem:[%s309] sm:$0x1] %v385
      %v387 = vmul.f32 %v337, %v350
      %vm388 = vcmp.eq.s32.totalorder %v317, 1
      %v389 = vsel %vm388, 1, 0
      %v390 = vcvt.s32.f32 %v389
      %v391 = vld [vmem:[%s295 + $0x1] sm:$0x1]
      %v392 = vmul.f32 %v387, %v390
      %v393 = vsel %vm357, %v392, 0.0
      %v394 = vrot.slane %v393, 4
      %v395 = vadd.f32 %v393, %v394
      %v396 = vrot.slane %v395, 2
      %v397 = vadd.f32 %v395, %v396
      %v398 = vrot.slane %v397, 1
      %v399 = vadd.f32 %v397, %v398
      %v400 = vadd.f32 %v391, %v399
      %401 = vst [vmem:[%s295 + $0x1] sm:$0x1] %v400
      %v402 = vld [vmem:[%s302 + $0x1] sm:$0x1]
      %v403 = vsel %vm357, %v387, 0.0
      %v404 = vrot.slane %v403, 4
      %v405 = vadd.f32 %v403, %v404
      %v406 = vrot.slane %v405, 2
      %v407 = vadd.f32 %v405, %v406
      %v408 = vrot.slane %v407, 1
      %v409 = vadd.f32 %v407, %v408
      %v410 = vadd.f32 %v402, %v409
      %411 = vst [vmem:[%s302 + $0x1] sm:$0x1] %v410
      %v412 = vld [vmem:[%s309 + $0x1] sm:$0x1]
      %v413 = vsel %vm357, %v390, 0.0
      %v414 = vrot.slane %v413, 4
      %v415 = vadd.f32 %v413, %v414
      %v416 = vrot.slane %v415, 2
      %v417 = vadd.f32 %v415, %v416
      %v418 = vrot.slane %v417, 1
      %v419 = vadd.f32 %v417, %v418
      %v420 = vadd.f32 %v412, %v419
      %421 = vst [vmem:[%s309 + $0x1] sm:$0x1] %v420
      %v422 = vmul.f32 %v341, %v350
      %vm423 = vcmp.eq.s32.totalorder %v317, 2
      %v424 = vsel %vm423, 1, 0
      %v425 = vcvt.s32.f32 %v424
      %v426 = vld [vmem:[%s295 + $0x2] sm:$0x1]
      %v427 = vmul.f32 %v422, %v425
      %v428 = vsel %vm357, %v427, 0.0
      %v429 = vrot.slane %v428, 4
      %v430 = vadd.f32 %v428, %v429
      %v431 = vrot.slane %v430, 2
      %v432 = vadd.f32 %v430, %v431
      %v433 = vrot.slane %v432, 1
      %v434 = vadd.f32 %v432, %v433
      %v435 = vadd.f32 %v426, %v434
      %436 = vst [vmem:[%s295 + $0x2] sm:$0x1] %v435
      %v437 = vld [vmem:[%s302 + $0x2] sm:$0x1]
      %v438 = vsel %vm357, %v422, 0.0
      %v439 = vrot.slane %v438, 4
      %v440 = vadd.f32 %v438, %v439
      %v441 = vrot.slane %v440, 2
      %v442 = vadd.f32 %v440, %v441
      %v443 = vrot.slane %v442, 1
      %v444 = vadd.f32 %v442, %v443
      %v445 = vadd.f32 %v437, %v444
      %446 = vst [vmem:[%s302 + $0x2] sm:$0x1] %v445
      %v447 = vld [vmem:[%s309 + $0x2] sm:$0x1]
      %v448 = vsel %vm357, %v425, 0.0
      %v449 = vrot.slane %v448, 4
      %v450 = vadd.f32 %v448, %v449
      %v451 = vrot.slane %v450, 2
      %v452 = vadd.f32 %v450, %v451
      %v453 = vrot.slane %v452, 1
      %v454 = vadd.f32 %v452, %v453
      %v455 = vadd.f32 %v447, %v454
      %456 = vst [vmem:[%s309 + $0x2] sm:$0x1] %v455
      %v457 = vmul.f32 %v345, %v350
      %vm458 = vcmp.eq.s32.totalorder %v317, 3
      %v459 = vsel %vm458, 1, 0
      %v460 = vcvt.s32.f32 %v459
      %v461 = vld [vmem:[%s295 + $0x3] sm:$0x1]
      %v462 = vmul.f32 %v457, %v460
      %v463 = vsel %vm357, %v462, 0.0
      %v464 = vrot.slane %v463, 4
      %v465 = vadd.f32 %v463, %v464
      %v466 = vrot.slane %v465, 2
      %v467 = vadd.f32 %v465, %v466
      %v468 = vrot.slane %v467, 1
      %v469 = vadd.f32 %v467, %v468
      %v470 = vadd.f32 %v461, %v469
      %471 = vst [vmem:[%s295 + $0x3] sm:$0x1] %v470
      %v472 = vld [vmem:[%s302 + $0x3] sm:$0x1]
      %v473 = vsel %vm357, %v457, 0.0
      %v474 = vrot.slane %v473, 4
      %v475 = vadd.f32 %v473, %v474
      %v476 = vrot.slane %v475, 2
      %v477 = vadd.f32 %v475, %v476
      %v478 = vrot.slane %v477, 1
      %v479 = vadd.f32 %v477, %v478
      %v480 = vadd.f32 %v472, %v479
      %481 = vst [vmem:[%s302 + $0x3] sm:$0x1] %v480
      %v482 = vld [vmem:[%s309 + $0x3] sm:$0x1]
      %v483 = vsel %vm357, %v460, 0.0
      %v484 = vrot.slane %v483, 4
      %v485 = vadd.f32 %v483, %v484
      %v486 = vrot.slane %v485, 2
      %v487 = vadd.f32 %v485, %v486
      %v488 = vrot.slane %v487, 1
      %v489 = vadd.f32 %v487, %v488
      %v490 = vadd.f32 %v482, %v489
      %491 = vst [vmem:[%s309 + $0x3] sm:$0x1] %v490
      %p492 = scmp.lt.s32.totalorder %s21, 1
      %s493 = scalar_select %p492, %s21, 1
      %p494 = scmp.lt.s32.totalorder %s22, 0
      %s495 = scalar_select %p494, %s22, 0
      %s496 = sadd.s32 %s495, %s493
      %s497 = smul.addr %s496, 4
      %s498 = scalar_lea.vmem %s2, %s497
      %p499 = scmp.lt.s32.totalorder %s21, 1
      %s500 = scalar_select %p499, %s21, 1
      %p501 = scmp.lt.s32.totalorder %s22, 0
      %s502 = scalar_select %p501, %s22, 0
      %s503 = sadd.s32 %s502, %s500
      %s504 = smul.addr %s503, 4
      %s505 = scalar_lea.vmem %s3, %s504
      %p506 = scmp.lt.s32.totalorder %s21, 1
      %s507 = scalar_select %p506, %s21, 1
      %p508 = scmp.lt.s32.totalorder %s22, 0
      %s509 = scalar_select %p508, %s22, 0
      %s510 = sadd.s32 %s509, %s507
      %s511 = smul.addr %s510, 4
      %s512 = scalar_lea.vmem %s4, %s511
      // Predicated region
      $region33: #{_tversky_loss_impl.1} parent=27 // pred_check
        %p513 = pneg %p115
      $region34: #{_tversky_loss_impl.1} parent=27 // pred_check_branch
        %515 = sbr.rel (%p513) target = $region36
      $region35: #{_tversky_loss_impl.1} parent=27 // pred_region
        _
      $region36: #{_tversky_loss_impl.1} parent=27 // pred_fallthru
        _
      // Predicated region
      $region37: #{_tversky_loss_impl.1} parent=27 // pred_check
        %p516 = pneg %p143
      $region38: #{_tversky_loss_impl.1} parent=27 // pred_check_branch
        %518 = sbr.rel (%p516) target = $region40
      $region39: #{_tversky_loss_impl.1} parent=27 // pred_region
        _
      $region40: #{_tversky_loss_impl.1} parent=27 // pred_fallthru
        _
      // Predicated region
      $region41: #{_tversky_loss_impl.1} parent=27 // pred_check
        %p519 = pneg %p171
      $region42: #{_tversky_loss_impl.1} parent=27 // pred_check_branch
        %521 = sbr.rel (%p519) target = $region44
      $region43: #{_tversky_loss_impl.1} parent=27 // pred_region
        _
      $region44: #{_tversky_loss_impl.1} parent=27 // pred_fallthru
        _
    $region28: #{_tversky_loss_impl.1} parent=5 // pred_fallthru
      _
    %p522 = scmp.le.s32.totalorder 2, %s11
    // Predicated region
    $region45: #{_tversky_loss_impl.1} parent=5 // pred_check
      %p523 = pneg %p522
    $region46: #{_tversky_loss_impl.1} parent=5 // pred_check_branch
      %525 = sbr.rel (%p523) target = $region48
    $region47: #{_tversky_loss_impl.1} parent=5 // pred_region
      %s526 = ssub.s32 %s11, 2
      // Predicated region
      $region49: #{_tversky_loss_impl.1} parent=47 // pred_check
        %p527 = pneg %p121
      $region50: #{_tversky_loss_impl.1} parent=47 // pred_check_branch
        %529 = sbr.rel (%p527) target = $region52
      $region51: #{_tversky_loss_impl.1} parent=47 // pred_region
        %p530 = scmp.lt.s32.totalorder %s24, 1
        %s531 = scalar_select %p530, %s24, 1
        %p532 = scmp.lt.s32.totalorder %s25, 0
        %s533 = scalar_select %p532, %s25, 0
        %s534 = sadd.s32 %s533, %s531
        %s535 = smul.addr %s534, 4
        %s536 = scalar_lea.vmem %s2, %s535
      $region52: #{_tversky_loss_impl.1} parent=47 // pred_fallthru
        _
      // Predicated region
      $region53: #{_tversky_loss_impl.1} parent=47 // pred_check
        %p537 = pneg %p149
      $region54: #{_tversky_loss_impl.1} parent=47 // pred_check_branch
        %539 = sbr.rel (%p537) target = $region56
      $region55: #{_tversky_loss_impl.1} parent=47 // pred_region
        %p540 = scmp.lt.s32.totalorder %s24, 1
        %s541 = scalar_select %p540, %s24, 1
        %p542 = scmp.lt.s32.totalorder %s25, 0
        %s543 = scalar_select %p542, %s25, 0
        %s544 = sadd.s32 %s543, %s541
        %s545 = smul.addr %s544, 4
        %s546 = scalar_lea.vmem %s3, %s545
      $region56: #{_tversky_loss_impl.1} parent=47 // pred_fallthru
        _
      // Predicated region
      $region57: #{_tversky_loss_impl.1} parent=47 // pred_check
        %p547 = pneg %p177
      $region58: #{_tversky_loss_impl.1} parent=47 // pred_check_branch
        %549 = sbr.rel (%p547) target = $region60
      $region59: #{_tversky_loss_impl.1} parent=47 // pred_region
        %p550 = scmp.lt.s32.totalorder %s24, 1
        %s551 = scalar_select %p550, %s24, 1
        %p552 = scmp.lt.s32.totalorder %s25, 0
        %s553 = scalar_select %p552, %s25, 0
        %s554 = sadd.s32 %s553, %s551
        %s555 = smul.addr %s554, 4
        %s556 = scalar_lea.vmem %s4, %s555
      $region60: #{_tversky_loss_impl.1} parent=47 // pred_fallthru
        _
    $region48: #{_tversky_loss_impl.1} parent=5 // pred_fallthru
      _
  $region6: #{_tversky_loss_impl.1} parent=0 // loop_footer
    %s15 = sadd.s32 1, %s11
  $region7: #{_tversky_loss_impl.1} parent=0 // loop_footer_branch
    %10 = sbr.rel target = $region3
  $region8: #{_tversky_loss_impl.1} parent=0 // loop_exit
    _

</llo_original>
